<compile_context>
chip_gen: v7x
topology: tpu7x:2x2x1
jax: 0.10.0
libtpu: 0.0.40
codegen_flags: <defaults>
</compile_context>

<pallas_src>
import functools

import jax
import jax.numpy as jnp
from jax.experimental import pallas as pl
from jax.experimental.pallas import tpu as pltpu


def _copy_kernel(x_ref, o_ref):
    # Pure elementwise pass-through of the current VMEM block.
    o_ref[...] = x_ref[...]


_LANE = 128
# ~4 MiB blocks: per-grid-step overhead becomes negligible while
# 2 (in) + 2 (out) double buffers = ~16 MiB, well under the 32 MiB scoped
# limit below and under v7x's 64 MiB physical VMEM.
_TARGET_BLOCK_BYTES = 4 * 1024 * 1024
_VMEM_LIMIT_BYTES = 32 * 1024 * 1024


def _pick_layout(n: int, itemsize: int):
    """Pick a lane-dense (rows, cols) view of a flat length-n buffer plus the
    number of rows per block. Returns None if n is not a multiple of 128."""
    if n % _LANE != 0:
        return None
    # Widest multiple-of-128 last dim that divides n.
    cols = _LANE
    for cand in (4096, 2048, 1024, 512, 256, 128):
        if n % cand == 0:
            cols = cand
            break
    rows = n // cols

    max_rows = max(1, _TARGET_BLOCK_BYTES // (cols * itemsize))
    if rows <= max_rows:
        block_rows = rows  # whole array in a single block (full-dim block ok)
    else:
        # Largest multiple of 8 <= max_rows that divides rows (TPU sublane rule:
        # block dim must be a multiple of 8 or equal the full dim).
        block_rows = None
        start = (min(max_rows, rows) // 8) * 8
        for cand in range(start, 0, -8):
            if rows % cand == 0:
                block_rows = cand
                break
        if block_rows is None:
            # Ragged row count with no multiple-of-8 divisor: take it in one block.
            block_rows = rows
    return rows, cols, block_rows


@functools.partial(jax.jit, static_argnames=("donate_buffer",))
def identity(x: jax.Array, *, donate_buffer: bool = False) -> jax.Array:
    """Identity forward pass (torch.nn.Identity): returns x unchanged.

    The copy runs in a Pallas kernel over large lane-dense blocks. With
    donate_buffer=True the Pallas output aliases the input buffer
    (input_output_aliases={0: 0}); in that case the caller must not reuse the
    original `x` array afterwards.
    """
    n = x.size
    if n == 0:
        return x

    layout = _pick_layout(n, jnp.dtype(x.dtype).itemsize)
    if layout is None:
        # Element count not a multiple of 128: padding would add two extra full
        # HBM passes, so just return x (exact identity semantics, zero traffic).
        return x

    rows, cols, block_rows = layout
    x2d = x.reshape(rows, cols)  # bitcast-style reshape under jit
    grid = (rows // block_rows,)

    out2d = pl.pallas_call(
        _copy_kernel,
        out_shape=jax.ShapeDtypeStruct((rows, cols), x.dtype),
        grid_spec=pltpu.PrefetchScalarGridSpec(
            num_scalar_prefetch=0,
            grid=grid,
            in_specs=[pl.BlockSpec((block_rows, cols), lambda i: (i, 0))],
            out_specs=pl.BlockSpec((block_rows, cols), lambda i: (i, 0)),
        ),
        compiler_params=pltpu.CompilerParams(
            dimension_semantics=("parallel",),
            vmem_limit_bytes=_VMEM_LIMIT_BYTES,
        ),
        input_output_aliases={0: 0} if donate_buffer else {},
    )(x2d)

    return out2d.reshape(x.shape)


if __name__ == "__main__":
    key = jax.random.PRNGKey(0)
    # Small NCHW input consistent with a classification-model feature map.
    x = jax.random.normal(key, (2, 4, 16, 16), dtype=jnp.float32)

    y = identity(x)
    jax.block_until_ready(y)

    assert y.shape == x.shape, (y.shape, x.shape)
    assert y.dtype == x.dtype, (y.dtype, x.dtype)
    assert bool(jnp.all(y == x)), "identity output mismatch"

    print("KERNEL_OK")
</pallas_src>

<mosaic_0001>
module attributes {stable_mosaic.version = 11 : i64} {
  func.func @_copy_kernel(%arg0: i32, %arg1: memref<1x2048xf32, #tpu.memory_space<vmem>>, %arg2: memref<1x2048xf32, #tpu.memory_space<vmem>>) attributes {dimension_semantics = [#tpu.dimension_semantics<parallel>], iteration_bounds = array<i64: 1>, scalar_prefetch = 0 : i64, scratch_operands = 0 : i64, tpu.core_type = #tpu.core_type<tc>, window_params = [{transform_indices = @transform_0, window_bounds = array<i64: 1, 2048>}, {transform_indices = @transform_1, window_bounds = array<i64: 1, 2048>}]} {
    %c0 = arith.constant 0 : index
    %c0_0 = arith.constant 0 : index
    %0 = vector.load %arg1[%c0, %c0_0] : memref<1x2048xf32, #tpu.memory_space<vmem>>, vector<1x2048xf32>
    %c0_1 = arith.constant 0 : index
    %c0_2 = arith.constant 0 : index
    %1 = vector.load %arg2[%c0_1, %c0_2] : memref<1x2048xf32, #tpu.memory_space<vmem>>, vector<1x2048xf32>
    tpu.vector_store %arg2[%c0_1, %c0_2], %0 {strides = array<i32>} : memref<1x2048xf32, #tpu.memory_space<vmem>>, vector<1x2048xf32>,
    return
  }
  func.func @transform_0(%arg0: i32) -> (i32, i32) {
    %c0_i32 = arith.constant 0 : i32
    %c0_i32_0 = arith.constant 0 : i32
    return %arg0, %c0_i32 : i32, i32
  }
  func.func @transform_1(%arg0: i32) -> (i32, i32) {
    %c0_i32 = arith.constant 0 : i32
    %c0_i32_0 = arith.constant 0 : i32
    return %arg0, %c0_i32 : i32, i32
  }
}

</mosaic_0001>

<llo_original>
// kernel: identity.1
$region0: #{identity.1}
  #allocation0 [shape = 'u32[]', space=smem, size = 0x4, offset = 0x4, fixed_abs, tag = 'smem constant byte address 0x4 - core index']
  #allocation1 [shape = 'u32[144,128]{1,0:T(1,128)}', space=vmem, size = 0x12000, scoped, tag = 'internal scratch']
  %s0 = inlined_call_operand.vmem [shape: f32[1,2048], index: 0, kind: input, shape index: {}]
  %s1 = inlined_call_operand.vmem [shape: f32[1,2048], index: 1, kind: output, shape index: {}]
  %s2 = sld [smem:[#allocation0]]
  $region14: #{identity.1} parent=0
    _
  %s4 = ssub.s32 1, %s2
  %s5 = scalar_select 0, %s4, %s2
  // Predicated region
  $region2: #{identity.1} parent=0 // pred_check
    _
  $region3: #{identity.1} parent=0 // pred_check_branch
    %7 = sbr.rel (0) target = $region5
  $region4: #{identity.1} parent=0 // pred_region
    _
  $region5: #{identity.1} parent=0 // pred_fallthru
    _
  %v8 = vld [vmem:[%s0] sm:$0xff]
  %v9 = vld [vmem:[%s0 + $0x8] sm:$0xff]
  %10 = vst [vmem:[%s1] sm:$0xff] %v8
  %11 = vst [vmem:[%s1 + $0x8] sm:$0xff] %v9
  // Predicated region
  $region6: #{identity.1} parent=0 // pred_check
    _
  $region7: #{identity.1} parent=0 // pred_check_branch
    %13 = sbr.rel (0) target = $region9
  $region8: #{identity.1} parent=0 // pred_region
    _
  $region9: #{identity.1} parent=0 // pred_fallthru
    _
  // Predicated region
  $region10: #{identity.1} parent=0 // pred_check
    _
  $region11: #{identity.1} parent=0 // pred_check_branch
    %15 = sbr.rel (0) target = $region13
  $region12: #{identity.1} parent=0 // pred_region
    _
  $region13: #{identity.1} parent=0 // pred_fallthru
    _

</llo_original>
